<compile_context>
chip_gen: v6e
topology: v6e:2x2x1
jax: 0.10.0
libtpu: 0.0.40
codegen_flags: <defaults>
</compile_context>

<pallas_src>
from functools import partial

import jax
import jax.numpy as jnp
import numpy as np
from jax.experimental import pallas as pl
from jax.experimental.pallas import tpu as pltpu


def _tpu_vmem_capacity_bytes():
    try:
        return int(pltpu.get_tpu_info().vmem_capacity_bytes)
    except Exception:
        return 64 << 20        # conservative fallback: v7x per-TensorCore VMEM


# ---------------------------------------------------------------------------
# Kernel 1: adaLN modulation  ->  SiLU(c) @ W_ada + b_ada   (B, 2*D)
# Tiled over the 2*D output columns so W_ada never has to fit VMEM whole.
# ---------------------------------------------------------------------------
def adaln_kernel(c_ref, w_ref, b_ref, o_ref, *, compute_dtype):
    c = c_ref[...].astype(jnp.float32)               # (B, D), resident
    s = c * jax.nn.sigmoid(c)                        # SiLU (EUP)
    o_ref[...] = (
        jnp.dot(s.astype(compute_dtype), w_ref[...],
                preferred_element_type=jnp.float32)
        + b_ref[...]
    )


def adaln_modulation(c, w_ada, b_ada, *, compute_dtype=jnp.bfloat16, tn=512):
    B, D = c.shape
    O2 = w_ada.shape[1]                              # 2*D
    w_ada = w_ada.astype(compute_dtype)              # halve HBM read of W_ada
    b_ada = b_ada.astype(jnp.float32).reshape(1, O2)

    if tn >= O2:
        tn = O2                                      # single full-width block
    else:
        tn = max(128, (tn // 128) * 128)             # lane-aligned column tile
    n_tiles = pl.cdiv(O2, tn)

    cost = pl.CostEstimate(
        flops=2 * B * D * O2 + 4 * B * D * n_tiles,
        transcendentals=B * D * n_tiles,
        bytes_accessed=(c.dtype.itemsize * B * D
                        + w_ada.dtype.itemsize * D * O2
                        + 4 * (O2 + B * O2)),
    )
    return pl.pallas_call(
        partial(adaln_kernel, compute_dtype=compute_dtype),
        out_shape=jax.ShapeDtypeStruct((B, O2), jnp.float32),
        grid=(n_tiles,),
        in_specs=[
            pl.BlockSpec((B, D), lambda n: (0, 0)),      # c resident
            pl.BlockSpec((D, tn), lambda n: (0, n)),     # W_ada column tile
            pl.BlockSpec((1, tn), lambda n: (0, n)),     # bias tile
        ],
        out_specs=pl.BlockSpec((B, tn), lambda n: (0, n)),
        compiler_params=pltpu.CompilerParams(
            dimension_semantics=("parallel",)),
        cost_estimate=cost,
    )(c, w_ada, b_ada)


# ---------------------------------------------------------------------------
# Kernel 2: RMSNorm + modulate + final Linear, tiled over (seq-tiles, batch)
# ---------------------------------------------------------------------------
def head_kernel(x_ref, m_ref, w_ref, beff_ref, o_ref, *, eps, compute_dtype):
    x = x_ref[0].astype(jnp.float32)                      # (T_TILE, D) f32
    ms = jnp.mean(x * x, axis=-1, keepdims=True)          # (T_TILE, 1)
    # RMSNorm weight and (1 + scale) are pre-folded into one multiplier m;
    # fused elementwise chain keeps a single (T_TILE, D) f32 temporary.
    y = x * (jax.lax.rsqrt(ms + eps) * m_ref[0])          # (T_TILE, D)
    out = jnp.dot(y.astype(compute_dtype), w_ref[...],
                  preferred_element_type=jnp.float32) + beff_ref[0]
    o_ref[0] = out.astype(o_ref.dtype)


def head_forward(x, c, params, *, eps=1e-6, t_tile=None,
                 compute_dtype=jnp.bfloat16):
    """x: (B, T, D) f32/bf16, c: (B, D) f32/bf16 -> (B, T, O) in x.dtype."""
    B, T, D = x.shape
    O = params["w_lin"].shape[1]

    # --- adaLN modulation (tiled Pallas kernel) -----------------------------
    ada = adaln_modulation(c, params["w_ada"], params["b_ada"],
                           compute_dtype=compute_dtype)    # (B, 2D) f32
    shift, scale = ada[:, :D], ada[:, D:]

    # --- lane-dense output: pad O up to a multiple of 128 (zero columns) ----
    O_pad = pl.cdiv(O, 128) * 128
    w_lin = params["w_lin"].astype(compute_dtype)          # MXU dtype (bf16 default)
    b_lin = params["b_lin"].astype(jnp.float32).reshape(1, O)
    if O_pad != O:
        w_lin = jnp.pad(w_lin, ((0, 0), (0, O_pad - O)))
        b_lin = jnp.pad(b_lin, ((0, 0), (0, O_pad - O)))

    # --- fold adaLN into per-batch multiplier / effective bias (hoisted) ----
    #   (normed*g*(1+scale) + shift) @ W + b == (normed*m) @ W + (shift@W + b)
    g = params["g"].astype(jnp.float32).reshape(1, D)
    mult = (g * (1.0 + scale)).reshape(B, 1, D)            # (B, 1, D)  f32
    b_eff = (jnp.dot(shift.astype(compute_dtype), w_lin,
                     preferred_element_type=jnp.float32)
             + b_lin).reshape(B, 1, O_pad)                 # (B, 1, O_pad) f32

    # --- sequence-tile size & VMEM budget per generation ---------------------
    vmem_cap = _tpu_vmem_capacity_bytes()
    if t_tile is None:
        if vmem_cap >= (100 << 20):            # v5e / v6e (128 MiB VMEM)
            t_tile = 1024
        else:                                  # v7x (64 MiB VMEM)
            t_tile = 512 if x.dtype == jnp.bfloat16 else 384
    T_TILE = min(t_tile, T)
    if T_TILE < T:
        T_TILE = max(8, (T_TILE // 8) * 8)     # sublane-aligned tiles
    grid = (pl.cdiv(T, T_TILE), B)             # seq tiles first -> megacore splits them
    vmem_limit = min(int(vmem_cap * 3 // 4), 96 << 20)

    out = pl.pallas_call(
        partial(head_kernel, eps=eps, compute_dtype=compute_dtype),
        out_shape=jax.ShapeDtypeStruct((B, T, O_pad), x.dtype),
        grid=grid,
        in_specs=[
            pl.BlockSpec((1, T_TILE, D), lambda t, b: (b, t, 0)),    # x tile
            pl.BlockSpec((1, 1, D), lambda t, b: (b, 0, 0)),         # mult (per batch)
            pl.BlockSpec((D, O_pad), lambda t, b: (0, 0)),           # W (resident)
            pl.BlockSpec((1, 1, O_pad), lambda t, b: (b, 0, 0)),     # b_eff (per batch)
        ],
        out_specs=pl.BlockSpec((1, T_TILE, O_pad), lambda t, b: (b, t, 0)),
        compiler_params=pltpu.CompilerParams(
            dimension_semantics=("parallel", "parallel"),
            vmem_limit_bytes=vmem_limit,
        ),
    )(x, mult, w_lin, b_eff)

    # TODO(synk): consumers that accept the O_pad-padded slab should skip this
    # slice (it is one extra pass over the output).
    return out[..., :O] if O_pad != O else out


# ---------------------------------------------------------------------------
# Pure-JAX reference (for a correctness check)
# ---------------------------------------------------------------------------
def head_forward_ref(x, c, params, eps=1e-6):
    cf = c.astype(jnp.float32)
    s = cf * jax.nn.sigmoid(cf)
    ada = s @ params["w_ada"] + params["b_ada"]
    D = x.shape[-1]
    shift, scale = ada[:, :D], ada[:, D:]
    xf = x.astype(jnp.float32)
    normed = xf * jax.lax.rsqrt(jnp.mean(xf * xf, -1, keepdims=True) + eps)
    normed = normed * params["g"]
    y = normed * (1.0 + scale[:, None, :]) + shift[:, None, :]
    return y @ params["w_lin"] + params["b_lin"]


if __name__ == "__main__":
    # Small config consistent with the module:
    #   n_embd = 32, patch_k = (1, 2, 2), in_channels = 4 -> out_dim = 16
    B, T, D = 2, 8, 32
    patch_k = (1, 2, 2)
    in_channels = 4
    O = int(np.prod(patch_k)) * in_channels          # 16

    key = jax.random.PRNGKey(0)
    kx, kc, k1, k2, k3, k4 = jax.random.split(key, 6)

    x = jax.random.normal(kx, (B, T, D), dtype=jnp.float32)
    c = jax.random.normal(kc, (B, D), dtype=jnp.float32)

    params = {
        "g": jnp.ones((D,), jnp.float32),                                  # RMSNorm weight
        "w_lin": 0.05 * jax.random.normal(k1, (D, O), dtype=jnp.float32),  # final Linear
        "b_lin": 0.01 * jax.random.normal(k2, (O,), dtype=jnp.float32),
        "w_ada": 0.05 * jax.random.normal(k3, (D, 2 * D), dtype=jnp.float32),
        "b_ada": 0.01 * jax.random.normal(k4, (2 * D,), dtype=jnp.float32),
    }

    ref = head_forward_ref(x, c, params)

    # 1) f32 compute path (semantics check, tight tolerance)
    out32 = jax.block_until_ready(
        head_forward(x, c, params, compute_dtype=jnp.float32))
    assert out32.shape == (B, T, O), out32.shape
    assert jnp.allclose(out32, ref, atol=1e-4, rtol=1e-4), "f32 mismatch vs reference"

    # 2) default bf16-MXU path (f32 accumulation; looser tolerance)
    out_bf = jax.block_until_ready(head_forward(x, c, params))
    assert out_bf.shape == (B, T, O), out_bf.shape
    assert jnp.allclose(out_bf, ref, atol=3e-2, rtol=3e-2), "bf16-MXU mismatch vs reference"

    # 3) bf16 activations end-to-end (kernel upcasts internally for RMSNorm)
    xb = x.astype(jnp.bfloat16)
    cb = c.astype(jnp.bfloat16)
    out_b = jax.block_until_ready(head_forward(xb, cb, params))
    ref_b = head_forward_ref(xb.astype(jnp.float32), cb.astype(jnp.float32), params)
    assert out_b.shape == (B, T, O), out_b.shape
    assert jnp.allclose(out_b.astype(jnp.float32), ref_b, atol=5e-2, rtol=5e-2), \
        "bf16 input mismatch vs reference"

    print("KERNEL_OK")
</pallas_src>

<mosaic_0001>
module attributes {stable_mosaic.version = 11 : i64} {
  func.func @adaln_kernel(%arg0: i32, %arg1: memref<2x32xf32, #tpu.memory_space<vmem>>, %arg2: memref<32x64xf32, #tpu.memory_space<vmem>>, %arg3: memref<1x64xf32, #tpu.memory_space<vmem>>, %arg4: memref<2x64xf32, #tpu.memory_space<vmem>>) attributes {dimension_semantics = [#tpu.dimension_semantics<parallel>], iteration_bounds = array<i64: 1>, scalar_prefetch = 0 : i64, scratch_operands = 0 : i64, tpu.core_type = #tpu.core_type<tc>, window_params = [{pipeline_mode = #tpu.pipeline_mode<synchronous>, transform_indices = @transform_0, window_bounds = array<i64: 2, 32>}, {transform_indices = @transform_1, window_bounds = array<i64: 32, 64>}, {transform_indices = @transform_2, window_bounds = array<i64: 1, 64>}, {transform_indices = @transform_3, window_bounds = array<i64: 2, 64>}]} {
    %c0 = arith.constant 0 : index
    %c0_0 = arith.constant 0 : index
    %0 = vector.load %arg1[%c0, %c0_0] : memref<2x32xf32, #tpu.memory_space<vmem>>, vector<2x32xf32>
    %1 = arith.negf %0 : vector<2x32xf32>
    %2 = math.exp %1 : vector<2x32xf32>
    %cst = arith.constant 1.000000e+00 : f32
    %3 = vector.broadcast %cst : f32 to vector<2x32xf32>
    %4 = arith.addf %3, %2 : vector<2x32xf32>
    %5 = arith.divf %3, %4 : vector<2x32xf32>
    %6 = arith.mulf %0, %5 : vector<2x32xf32>
    %c0_1 = arith.constant 0 : index
    %c0_2 = arith.constant 0 : index
    %7 = vector.load %arg2[%c0_1, %c0_2] : memref<32x64xf32, #tpu.memory_space<vmem>>, vector<32x64xf32>
    %cst_3 = arith.constant dense<0.000000e+00> : vector<2x64xf32>
    %8 = tpu.matmul %6, %7, %cst_3 {dimension_numbers = #tpu.dot_dimension_numbers<[1], [0], [0], [1], [0, 0, 1, 1], [], []>} : vector<2x32xf32>, vector<32x64xf32>, vector<2x64xf32> -> vector<2x64xf32>
    %c0_4 = arith.constant 0 : index
    %c0_5 = arith.constant 0 : index
    %9 = vector.load %arg3[%c0_4, %c0_5] : memref<1x64xf32, #tpu.memory_space<vmem>>, vector<1x64xf32>
    %10 = vector.broadcast %9 : vector<1x64xf32> to vector<2x64xf32>
    %11 = arith.addf %8, %10 : vector<2x64xf32>
    %c0_6 = arith.constant 0 : index
    %c0_7 = arith.constant 0 : index
    %12 = vector.load %arg4[%c0_6, %c0_7] : memref<2x64xf32, #tpu.memory_space<vmem>>, vector<2x64xf32>
    tpu.vector_store %arg4[%c0_6, %c0_7], %11 {strides = array<i32>} : memref<2x64xf32, #tpu.memory_space<vmem>>, vector<2x64xf32>,
    return
  }
  func.func @transform_0(%arg0: i32) -> (i32, i32) {
    %c0_i32 = arith.constant 0 : i32
    %c0_i32_0 = arith.constant 0 : i32
    %c0_i32_1 = arith.constant 0 : i32
    return %c0_i32, %c0_i32_0 : i32, i32
  }
  func.func @transform_1(%arg0: i32) -> (i32, i32) {
    %c0_i32 = arith.constant 0 : i32
    %c0_i32_0 = arith.constant 0 : i32
    return %c0_i32, %arg0 : i32, i32
  }
  func.func @transform_2(%arg0: i32) -> (i32, i32) {
    %c0_i32 = arith.constant 0 : i32
    %c0_i32_0 = arith.constant 0 : i32
    return %c0_i32, %arg0 : i32, i32
  }
  func.func @transform_3(%arg0: i32) -> (i32, i32) {
    %c0_i32 = arith.constant 0 : i32
    %c0_i32_0 = arith.constant 0 : i32
    return %c0_i32, %arg0 : i32, i32
  }
}

</mosaic_0001>

<llo_original>
// kernel: tpu_custom_call.1
$region0: #{tpu_custom_call.1}
  #allocation0 [shape = 'u32[]', space=smem, size = 0x4, offset = 0x4, fixed_abs, tag = 'smem constant byte address 0x4 - core index']
  #allocation1 [shape = 'u32[144,128]{1,0:T(1,128)}', space=vmem, size = 0x12000, scoped, tag = 'internal scratch']
  %s0 = inlined_call_operand.hbm [shape: f32[2,32], index: 0, kind: input, shape index: {}]
  %s1 = inlined_call_operand.hbm [shape: f32[32,64], index: 1, kind: input, shape index: {}]
  %s2 = inlined_call_operand.vmem [shape: f32[1,64], index: 2, kind: input, shape index: {}]
  %s3 = inlined_call_operand.hbm [shape: f32[2,64], index: 3, kind: output, shape index: {}]
  %s4 = sld [smem:[#allocation0]]
  $region30: #{tpu_custom_call.1} parent=0
    _
  %s6 = ssub.s32 1, %s4
  %s7 = scalar_select 0, %s6, %s4
  $region1: #{tpu_custom_call.1} parent=0
    #allocation2 [shape = 'u8[1024]{0}', space=vmem, size = 0x400, scoped, tag = 'input window, operand 0, single buffered']
    #allocation3 [shape = 's32[1]{0}', space=sflag, size = 0x4, scoped, tag = 'scoped memory for tpu_custom_call.1']
    #allocation4 [shape = 's32[1]{0}', space=sflag, size = 0x4, scoped, tag = 'scoped memory for tpu_custom_call.1']
    #allocation5 [shape = 'u8[16384]{0}', space=vmem, size = 0x4000, scoped, tag = 'input window, operand 1, single buffered']
    #allocation6 [shape = 's32[1]{0}', space=sflag, size = 0x4, scoped, tag = 'scoped memory for tpu_custom_call.1']
    #allocation7 [shape = 'u8[1024]{0}', space=vmem, size = 0x400, scoped, tag = 'output window, operand 0, single buffered']
    %8 = vsyncpa [#allocation3], 0
    %9 = vsyncpa [#allocation6], 0
    %10 = vsyncpa [#allocation4], 0
    // Predicated region
    $region2: #{tpu_custom_call.1} parent=1 // pred_check
      _
    $region3: #{tpu_custom_call.1} parent=1 // pred_check_branch
      %12 = sbr.rel (0) target = $region5
    $region4: #{tpu_custom_call.1} parent=1 // pred_region
      %s14 = ssub.s32 32, 32
      %15 = vsyncadd [#allocation3], %s14
      %s17 = sshll.u32 [#allocation2], 4
      %s18 = int_to_ptr.vmem [resolvable:$true] %s17
      %20 = dma.hbm_to_vmem [thread:$0]  %s0, 32, %s18, [#allocation3]
    $region5: #{tpu_custom_call.1} parent=1 // pred_fallthru
      _
    // Predicated region
    $region6: #{tpu_custom_call.1} parent=1 // pred_check
      _
    $region7: #{tpu_custom_call.1} parent=1 // pred_check_branch
      %22 = sbr.rel (0) target = $region9
    $region8: #{tpu_custom_call.1} parent=1 // pred_region
      %s24 = ssub.s32 512, 512
      %25 = vsyncadd [#allocation6], %s24
      %s26 = sshll.u32 [#allocation5], 4
      %s27 = int_to_ptr.vmem [resolvable:$true] %s26
      %32 = dma.hbm_to_vmem [thread:$0]  %s1, 512, %s27, [#allocation6], 128, 128, 8
    $region9: #{tpu_custom_call.1} parent=1 // pred_fallthru
      _
    // Predicated region
    $region10: #{tpu_custom_call.1} parent=1 // pred_check
      _
    $region11: #{tpu_custom_call.1} parent=1 // pred_check_branch
      %34 = sbr.rel (0) target = $region13
    $region12: #{tpu_custom_call.1} parent=1 // pred_region
      _
    $region13: #{tpu_custom_call.1} parent=1 // pred_fallthru
      _
    // Predicated region
    $region14: #{tpu_custom_call.1} parent=1 // pred_check
      _
    $region15: #{tpu_custom_call.1} parent=1 // pred_check_branch
      %36 = sbr.rel (0) target = $region17
    $region16: #{tpu_custom_call.1} parent=1 // pred_region
      %37 = dma.done [#allocation3], 32
    $region17: #{tpu_custom_call.1} parent=1 // pred_fallthru
      _
    // Predicated region
    $region18: #{tpu_custom_call.1} parent=1 // pred_check
      _
    $region19: #{tpu_custom_call.1} parent=1 // pred_check_branch
      %39 = sbr.rel (0) target = $region21
    $region20: #{tpu_custom_call.1} parent=1 // pred_region
      %40 = dma.done [#allocation6], 512
    $region21: #{tpu_custom_call.1} parent=1 // pred_fallthru
      _
    %v41 = vld [vmem:[#allocation2] sm:$0x3]
    %v42 = vxor.u32 %v41, 2147483648
    %v43 = vmul.f32 %v42, 1.442695
    %v44 = vpow.pop %v43
    %v45 = vadd.f32 %v44, 1.0
    %v46 = vrcp.pop %v45
    %v47 = vmul.f32 1.0, %v46
    %v48 = vmul.f32 %v41, %v47
    %v49 = vld [vmem:[#allocation5] sm:$0xff]
    %v50 = vld [vmem:[#allocation5 + $0x8] sm:$0xff]
    %v51 = vld [vmem:[#allocation5 + $0x10] sm:$0xff]
    %v52 = vld [vmem:[#allocation5 + $0x18] sm:$0xff]
    %v53 = vld [vmem:[%s2] sm:$0x1]
    %v55 = vlaneseq
    %v56 = vshrl.u32 %v55, 7
    %v57 = vsub.s32 0, %v56
    %v58 = vrot.slane %v53, %v57
    %vm60 = vcmask 261120
    %v62 = vsel %vm60, %v48, 0
    %64 = vmatprep.subr.mxu0 0.0
    %65 = vmatpush1.msra.mxu0 0.0
    %66 = vmatprep.subr.mxu0 0.0
    %67 = vmatpush1.msra.mxu0 0.0
    %68 = vmatprep.subr.mxu0 0.0
    %69 = vmatpush1.msra.mxu0 0.0
    %70 = vmatprep.subr.mxu0 0.0
    %71 = vmatpush1.msra.mxu0 0.0
    %72 = vmatprep.subr.mxu0 0.0
    %73 = vmatpush1.msra.mxu0 0.0
    %74 = vmatprep.subr.mxu0 0.0
    %75 = vmatpush1.msra.mxu0 0.0
    %76 = vmatprep.subr.mxu0 0.0
    %77 = vmatpush1.msra.mxu0 0.0
    %78 = vmatprep.subr.mxu0 0.0
    %79 = vmatpush1.msra.mxu0 0.0
    %80 = vmatprep.subr.mxu0 0.0
    %81 = vmatpush1.msra.mxu0 0.0
    %82 = vmatprep.subr.mxu0 0.0
    %83 = vmatpush1.msra.mxu0 0.0
    %84 = vmatprep.subr.mxu0 0.0
    %85 = vmatpush1.msra.mxu0 0.0
    %86 = vmatprep.subr.mxu0 0.0
    %87 = vmatpush1.msra.mxu0 0.0
    %88 = vmatprep.subr.mxu0 0.0
    %89 = vmatpush1.msra.mxu0 %v52
    %90 = vmatprep.subr.mxu0 0.0
    %91 = vmatpush1.msra.mxu0 %v51
    %92 = vmatprep.subr.mxu0 0.0
    %93 = vmatpush1.msra.mxu0 %v50
    %94 = vmatprep.subr.mxu0 0.0
    %95 = vmatpush1.msra.mxu0 %v49
    %96 = vmatprep.subr.mxu0 0.0
    %97 = vmatpush2.msra.mxu0 0.0
    %98 = vmatprep.subr.mxu0 0.0
    %99 = vmatpush2.msra.mxu0 0.0
    %100 = vmatprep.subr.mxu0 0.0
    %101 = vmatpush2.msra.mxu0 0.0
    %102 = vmatprep.subr.mxu0 0.0
    %103 = vmatpush2.msra.mxu0 0.0
    %104 = vmatprep.subr.mxu0 0.0
    %105 = vmatpush2.msra.mxu0 0.0
    %106 = vmatprep.subr.mxu0 0.0
    %107 = vmatpush2.msra.mxu0 0.0
    %108 = vmatprep.subr.mxu0 0.0
    %109 = vmatpush2.msra.mxu0 0.0
    %110 = vmatprep.subr.mxu0 0.0
    %111 = vmatpush2.msra.mxu0 0.0
    %112 = vmatprep.subr.mxu0 0.0
    %113 = vmatpush2.msra.mxu0 0.0
    %114 = vmatprep.subr.mxu0 0.0
    %115 = vmatpush2.msra.mxu0 0.0
    %116 = vmatprep.subr.mxu0 0.0
    %117 = vmatpush2.msra.mxu0 0.0
    %118 = vmatprep.subr.mxu0 0.0
    %119 = vmatpush2.msra.mxu0 0.0
    %120 = vmatprep.subr.mxu0 0.0
    %121 = vmatpush2.msra.mxu0 0.0
    %122 = vmatprep.subr.mxu0 0.0
    %123 = vmatpush2.msra.mxu0 0.0
    %124 = vmatprep.subr.mxu0 0.0
    %125 = vmatpush2.msra.mxu0 0.0
    %126 = vmatprep.subr.mxu0 0.0
    %127 = vmatpush2.msra.mxu0 0.0
    %128 = vmatprep.mubr.f32.mxu0 0.0
    %129 = vmatmul.mubr.f32.gmra.mxu0 %v62
    %v130 = vpop.f32.mrf.mxu0
    %v131 = vadd.f32 %v58, %v130
    %v132 = vpop.f32.mrf.mxu0
    %133 = vdwg.mxu0
    %vm134 = vcmask 517120
    %135 = vst.msk [vmem:[#allocation7] sm:$0x3] %vm134, %v131
    // Predicated region
    $region22: #{tpu_custom_call.1} parent=1 // pred_check
      _
    $region23: #{tpu_custom_call.1} parent=1 // pred_check_branch
      %137 = sbr.rel (0) target = $region25
    $region24: #{tpu_custom_call.1} parent=1 // pred_region
      %s139 = ssub.s32 32, 32
      %140 = vsyncadd [#allocation4], %s139
      %s142 = sshll.u32 [#allocation7], 4
      %s143 = int_to_ptr.vmem [resolvable:$true] %s142
      %145 = dma.vmem_to_hbm [thread:$0]  %s143, 32, %s3, [#allocation4]
    $region25: #{tpu_custom_call.1} parent=1 // pred_fallthru
      _
    // Predicated region
    $region26: #{tpu_custom_call.1} parent=1 // pred_check
      _
    $region27: #{tpu_custom_call.1} parent=1 // pred_check_branch
      %147 = sbr.rel (0) target = $region29
    $region28: #{tpu_custom_call.1} parent=1 // pred_region
      %148 = dma.done [#allocation4], 32
    $region29: #{tpu_custom_call.1} parent=1 // pred_fallthru
      _
    %149 = vsyncpa [#allocation3], 1
    %150 = vsyncpa [#allocation6], 1
    %151 = vsyncpa [#allocation4], 1

</llo_original>
